<compile_context>
chip_gen: v6e
topology: v6e:2x2x1
jax: 0.10.0
libtpu: 0.0.40
codegen_flags: <defaults>
</compile_context>

<pallas_src>
import functools

import jax
import jax.numpy as jnp
from jax.experimental import pallas as pl
from jax.experimental.pallas import tpu as pltpu

NODE = 30
IN_DIM = 3
OUT_DIM = 1
NUM_HIDDEN = 5          # fc2..fc6 (30 -> 30)

NODE_PAD = 32           # 30 -> 32 (sublane-aligned); zero padding is inert

MAX_TILE_B = 8192       # max batch lanes per grid step (sweepable 4096..16384)
MAX_CHUNK = 512         # inner chunk: h is (32, <=512) f32 -> <=16 vregs


def _round_up(a, m):
    return ((a + m - 1) // m) * m


def mlp_kernel(x_ref, w1_ref, b1_ref, wh_ref, bh_ref, w7_ref, b7_ref, o_ref,
               *, chunk, n_chunks):
    """One batch tile; batch occupies the 128-lane axis inside the layer chain.

    x_ref : (tile_b, 3)   raw batch-major input tile (no pre-transpose)
    w1_ref: (32, 3)       b1_ref: (32, 1)
    wh_ref: (5, 32, 32)   bh_ref: (5, 32, 1)
    w7_ref: (1, 32)       b7_ref: (1, 1)
    o_ref : (1, tile_b)   lane-dense output row
    """

    def body(c, carry):
        off = pl.multiple_of(c * chunk, chunk)
        xc = x_ref[pl.ds(off, chunk), :]                       # (chunk, 3)

        # Layer 1: h = W1 @ xc^T (contract dim 1 of both -> q@k^T pattern);
        # result is (features, batch-on-lanes) for the rest of the chain.
        h = jax.lax.dot_general(
            w1_ref[...], xc, (((1,), (1,)), ((), ())),
            preferred_element_type=jnp.float32)                # (32, chunk)
        h = jnp.maximum(h + b1_ref[...], 0.0)

        for l in range(NUM_HIDDEN):                            # short, unrolled
            h = jnp.dot(wh_ref[l], h, preferred_element_type=jnp.float32)
            h = jnp.maximum(h + bh_ref[l], 0.0)

        out = jnp.dot(w7_ref[...], h,
                      preferred_element_type=jnp.float32) + b7_ref[...]
        o_ref[:, pl.ds(off, chunk)] = out.astype(o_ref.dtype)  # (1, chunk)
        return carry

    jax.lax.fori_loop(0, n_chunks, body, None, unroll=True)


def make_params(key):
    """PyTorch-convention params: W is (out, in), b is (out,)."""
    dims = [IN_DIM] + [NODE] * 6 + [OUT_DIM]
    params = []
    for li in range(7):
        fan_in, fan_out = dims[li], dims[li + 1]
        key, kw, kb = jax.random.split(key, 3)
        bound = 1.0 / (float(fan_in) ** 0.5)
        w = jax.random.uniform(kw, (fan_out, fan_in), jnp.float32, -bound, bound)
        b = jax.random.uniform(kb, (fan_out,), jnp.float32, -bound, bound)
        params.append((w, b))
    return params


def pack_params(params):
    """Pad/stack PyTorch-layout params into the kernel's padded layout."""
    (w1, b1) = params[0]
    (w7, b7) = params[6]

    w1_k = jnp.zeros((NODE_PAD, IN_DIM), jnp.float32).at[:NODE, :].set(w1)
    b1_k = jnp.zeros((NODE_PAD, 1), jnp.float32).at[:NODE, 0].set(b1)

    wh = jnp.zeros((NUM_HIDDEN, NODE_PAD, NODE_PAD), jnp.float32)
    bh = jnp.zeros((NUM_HIDDEN, NODE_PAD, 1), jnp.float32)
    for i in range(NUM_HIDDEN):
        w, b = params[1 + i]
        wh = wh.at[i, :NODE, :NODE].set(w)
        bh = bh.at[i, :NODE, 0].set(b)

    w7_k = jnp.zeros((OUT_DIM, NODE_PAD), jnp.float32).at[:, :NODE].set(w7)
    b7_k = jnp.zeros((OUT_DIM, 1), jnp.float32).at[:, 0].set(b7)

    return w1_k, b1_k, wh, bh, w7_k, b7_k


@jax.jit
def net_forward(x, packed):
    """x: (B, 3) float32 -> (B, 1) float32, identical semantics to Net.forward."""
    B = x.shape[0]

    # Tile selection: as large as possible, but always >=2 grid steps so the
    # batch grid can be sharded across both TensorCores on v7x.
    tile_b = min(MAX_TILE_B, _round_up(pl.cdiv(B, 2), 128))
    nb = pl.cdiv(B, tile_b)
    b_pad = nb * tile_b
    chunk = next(c for c in (MAX_CHUNK, 256, 128) if tile_b % c == 0)
    n_chunks = tile_b // chunk

    xf = x.astype(jnp.float32)
    if b_pad != B:
        xf = jnp.pad(xf, ((0, b_pad - B), (0, 0)))   # zero rows, sliced away later

    w1_k, b1_k, wh, bh, w7_k, b7_k = packed

    flops = 2 * b_pad * (NODE * IN_DIM + NUM_HIDDEN * NODE * NODE + NODE * OUT_DIM)
    weight_bytes = 4 * (w1_k.size + b1_k.size + wh.size + bh.size
                        + w7_k.size + b7_k.size)
    cost = pl.CostEstimate(
        flops=flops,
        transcendentals=0,
        bytes_accessed=4 * (IN_DIM + OUT_DIM) * b_pad + int(weight_bytes),
    )

    kernel = functools.partial(mlp_kernel, chunk=chunk, n_chunks=n_chunks)

    out_row = pl.pallas_call(
        kernel,
        out_shape=jax.ShapeDtypeStruct((1, b_pad), jnp.float32),
        grid_spec=pltpu.PrefetchScalarGridSpec(
            num_scalar_prefetch=0,
            grid=(nb,),
            in_specs=[
                pl.BlockSpec((tile_b, IN_DIM), lambda i: (i, 0)),            # x tile
                pl.BlockSpec((NODE_PAD, IN_DIM), lambda i: (0, 0)),          # W1
                pl.BlockSpec((NODE_PAD, 1), lambda i: (0, 0)),               # b1
                pl.BlockSpec((NUM_HIDDEN, NODE_PAD, NODE_PAD),
                             lambda i: (0, 0, 0)),                           # stacked Wh
                pl.BlockSpec((NUM_HIDDEN, NODE_PAD, 1),
                             lambda i: (0, 0, 0)),                           # stacked bh
                pl.BlockSpec((OUT_DIM, NODE_PAD), lambda i: (0, 0)),         # W7
                pl.BlockSpec((OUT_DIM, 1), lambda i: (0, 0)),                # b7
            ],
            out_specs=pl.BlockSpec((1, tile_b), lambda i: (0, i)),           # lane-dense out
        ),
        compiler_params=pltpu.CompilerParams(
            dimension_semantics=("parallel",),       # megacore sharding on v7x
            vmem_limit_bytes=32 * 1024 * 1024,       # ~9 MiB worst case; safe on v5e/v6e/v7x
        ),
        cost_estimate=cost,
    )(xf, w1_k, b1_k, wh, bh, w7_k, b7_k)

    # Strip batch padding, restore PyTorch (B, 1) shape.
    return out_row[0, :B].reshape(B, OUT_DIM)


def net_forward_ref(x, params):
    """Pure-JAX reference (PyTorch semantics: x @ W.T + b)."""
    h = x
    for i, (w, b) in enumerate(params):
        h = h @ w.T + b
        if i < 6:
            h = jnp.maximum(h, 0.0)
    return h


if __name__ == "__main__":
    key = jax.random.PRNGKey(0)
    key, kx = jax.random.split(key)

    B = 200  # not a multiple of the tile -> exercises pad/slice path; >=2 grid steps
    x = jax.random.normal(kx, (B, IN_DIM), dtype=jnp.float32)

    params = make_params(key)
    packed = pack_params(params)

    out = jax.block_until_ready(net_forward(x, packed))

    ref = net_forward_ref(x, params)
    assert out.shape == (B, OUT_DIM)
    assert jnp.allclose(out, ref, atol=1e-4, rtol=1e-4), "mismatch vs reference"

    print("KERNEL_OK")
</pallas_src>

<mosaic_0001>
module attributes {stable_mosaic.version = 11 : i64} {
  func.func @mlp_kernel(%arg0: i32, %arg1: memref<128x3xf32, #tpu.memory_space<vmem>>, %arg2: memref<32x3xf32, #tpu.memory_space<vmem>>, %arg3: memref<32x1xf32, #tpu.memory_space<vmem>>, %arg4: memref<5x32x32xf32, #tpu.memory_space<vmem>>, %arg5: memref<5x32x1xf32, #tpu.memory_space<vmem>>, %arg6: memref<1x32xf32, #tpu.memory_space<vmem>>, %arg7: memref<1x1xf32, #tpu.memory_space<vmem>>, %arg8: memref<1x128xf32, #tpu.memory_space<vmem>>) attributes {dimension_semantics = [#tpu.dimension_semantics<parallel>], iteration_bounds = array<i64: 2>, scalar_prefetch = 0 : i64, scratch_operands = 0 : i64, tpu.core_type = #tpu.core_type<tc>, window_params = [{transform_indices = @transform_0, window_bounds = array<i64: 128, 3>}, {pipeline_mode = #tpu.pipeline_mode<synchronous>, transform_indices = @transform_1, window_bounds = array<i64: 32, 3>}, {pipeline_mode = #tpu.pipeline_mode<synchronous>, transform_indices = @transform_2, window_bounds = array<i64: 32, 1>}, {pipeline_mode = #tpu.pipeline_mode<synchronous>, transform_indices = @transform_3, window_bounds = array<i64: 5, 32, 32>}, {pipeline_mode = #tpu.pipeline_mode<synchronous>, transform_indices = @transform_4, window_bounds = array<i64: 5, 32, 1>}, {pipeline_mode = #tpu.pipeline_mode<synchronous>, transform_indices = @transform_5, window_bounds = array<i64: 1, 32>}, {pipeline_mode = #tpu.pipeline_mode<synchronous>, transform_indices = @transform_6, window_bounds = array<i64: 1, 1>}, {transform_indices = @transform_7, window_bounds = array<i64: 1, 128>}]} {
    %c0_i32 = arith.constant 0 : i32
    %c128_i32 = arith.constant 128 : i32
    %0 = arith.muli %c0_i32, %c128_i32 : i32
    %1 = tpu.assume_multiple %0, 128 : i32
    %2 = arith.index_cast %1 : i32 to index
    %c0 = arith.constant 0 : index
    %3 = vector.load %arg1[%2, %c0] : memref<128x3xf32, #tpu.memory_space<vmem>>, vector<128x3xf32>
    %c0_0 = arith.constant 0 : index
    %c0_1 = arith.constant 0 : index
    %4 = vector.load %arg2[%c0_0, %c0_1] : memref<32x3xf32, #tpu.memory_space<vmem>>, vector<32x3xf32>
    %cst = arith.constant dense<0.000000e+00> : vector<32x128xf32>
    %5 = tpu.matmul %4, %3, %cst {dimension_numbers = #tpu.dot_dimension_numbers<[1], [1], [0], [0], [0, 0, 1, 0], [], []>} : vector<32x3xf32>, vector<128x3xf32>, vector<32x128xf32> -> vector<32x128xf32>
    %c0_2 = arith.constant 0 : index
    %c0_3 = arith.constant 0 : index
    %6 = vector.load %arg3[%c0_2, %c0_3] : memref<32x1xf32, #tpu.memory_space<vmem>>, vector<32x1xf32>
    %7 = vector.broadcast %6 : vector<32x1xf32> to vector<32x128xf32>
    %8 = arith.addf %5, %7 : vector<32x128xf32>
    %cst_4 = arith.constant 0.000000e+00 : f32
    %9 = vector.broadcast %cst_4 : f32 to vector<32x128xf32>
    %10 = arith.maximumf %8, %9 : vector<32x128xf32>
    %c0_5 = arith.constant 0 : index
    %c0_6 = arith.constant 0 : index
    %c0_7 = arith.constant 0 : index
    %11 = vector.load %arg4[%c0_5, %c0_6, %c0_7] : memref<5x32x32xf32, #tpu.memory_space<vmem>>, vector<1x32x32xf32>
    %12 = vector.shape_cast %11 : vector<1x32x32xf32> to vector<32x32xf32>
    %cst_8 = arith.constant dense<0.000000e+00> : vector<32x128xf32>
    %13 = tpu.matmul %12, %10, %cst_8 {dimension_numbers = #tpu.dot_dimension_numbers<[1], [0], [0], [1], [0, 0, 1, 1], [], []>} : vector<32x32xf32>, vector<32x128xf32>, vector<32x128xf32> -> vector<32x128xf32>
    %c0_9 = arith.constant 0 : index
    %c0_10 = arith.constant 0 : index
    %c0_11 = arith.constant 0 : index
    %14 = vector.load %arg5[%c0_9, %c0_10, %c0_11] : memref<5x32x1xf32, #tpu.memory_space<vmem>>, vector<1x32x1xf32>
    %15 = vector.shape_cast %14 : vector<1x32x1xf32> to vector<32x1xf32>
    %16 = vector.broadcast %15 : vector<32x1xf32> to vector<32x128xf32>
    %17 = arith.addf %13, %16 : vector<32x128xf32>
    %cst_12 = arith.constant 0.000000e+00 : f32
    %18 = vector.broadcast %cst_12 : f32 to vector<32x128xf32>
    %19 = arith.maximumf %17, %18 : vector<32x128xf32>
    %c1 = arith.constant 1 : index
    %c0_13 = arith.constant 0 : index
    %c0_14 = arith.constant 0 : index
    %20 = vector.load %arg4[%c1, %c0_13, %c0_14] : memref<5x32x32xf32, #tpu.memory_space<vmem>>, vector<1x32x32xf32>
    %21 = vector.shape_cast %20 : vector<1x32x32xf32> to vector<32x32xf32>
    %cst_15 = arith.constant dense<0.000000e+00> : vector<32x128xf32>
    %22 = tpu.matmul %21, %19, %cst_15 {dimension_numbers = #tpu.dot_dimension_numbers<[1], [0], [0], [1], [0, 0, 1, 1], [], []>} : vector<32x32xf32>, vector<32x128xf32>, vector<32x128xf32> -> vector<32x128xf32>
    %c1_16 = arith.constant 1 : index
    %c0_17 = arith.constant 0 : index
    %c0_18 = arith.constant 0 : index
    %23 = vector.load %arg5[%c1_16, %c0_17, %c0_18] : memref<5x32x1xf32, #tpu.memory_space<vmem>>, vector<1x32x1xf32>
    %24 = vector.shape_cast %23 : vector<1x32x1xf32> to vector<32x1xf32>
    %25 = vector.broadcast %24 : vector<32x1xf32> to vector<32x128xf32>
    %26 = arith.addf %22, %25 : vector<32x128xf32>
    %cst_19 = arith.constant 0.000000e+00 : f32
    %27 = vector.broadcast %cst_19 : f32 to vector<32x128xf32>
    %28 = arith.maximumf %26, %27 : vector<32x128xf32>
    %c2 = arith.constant 2 : index
    %c0_20 = arith.constant 0 : index
    %c0_21 = arith.constant 0 : index
    %29 = vector.load %arg4[%c2, %c0_20, %c0_21] : memref<5x32x32xf32, #tpu.memory_space<vmem>>, vector<1x32x32xf32>
    %30 = vector.shape_cast %29 : vector<1x32x32xf32> to vector<32x32xf32>
    %cst_22 = arith.constant dense<0.000000e+00> : vector<32x128xf32>
    %31 = tpu.matmul %30, %28, %cst_22 {dimension_numbers = #tpu.dot_dimension_numbers<[1], [0], [0], [1], [0, 0, 1, 1], [], []>} : vector<32x32xf32>, vector<32x128xf32>, vector<32x128xf32> -> vector<32x128xf32>
    %c2_23 = arith.constant 2 : index
    %c0_24 = arith.constant 0 : index
    %c0_25 = arith.constant 0 : index
    %32 = vector.load %arg5[%c2_23, %c0_24, %c0_25] : memref<5x32x1xf32, #tpu.memory_space<vmem>>, vector<1x32x1xf32>
    %33 = vector.shape_cast %32 : vector<1x32x1xf32> to vector<32x1xf32>
    %34 = vector.broadcast %33 : vector<32x1xf32> to vector<32x128xf32>
    %35 = arith.addf %31, %34 : vector<32x128xf32>
    %cst_26 = arith.constant 0.000000e+00 : f32
    %36 = vector.broadcast %cst_26 : f32 to vector<32x128xf32>
    %37 = arith.maximumf %35, %36 : vector<32x128xf32>
    %c3 = arith.constant 3 : index
    %c0_27 = arith.constant 0 : index
    %c0_28 = arith.constant 0 : index
    %38 = vector.load %arg4[%c3, %c0_27, %c0_28] : memref<5x32x32xf32, #tpu.memory_space<vmem>>, vector<1x32x32xf32>
    %39 = vector.shape_cast %38 : vector<1x32x32xf32> to vector<32x32xf32>
    %cst_29 = arith.constant dense<0.000000e+00> : vector<32x128xf32>
    %40 = tpu.matmul %39, %37, %cst_29 {dimension_numbers = #tpu.dot_dimension_numbers<[1], [0], [0], [1], [0, 0, 1, 1], [], []>} : vector<32x32xf32>, vector<32x128xf32>, vector<32x128xf32> -> vector<32x128xf32>
    %c3_30 = arith.constant 3 : index
    %c0_31 = arith.constant 0 : index
    %c0_32 = arith.constant 0 : index
    %41 = vector.load %arg5[%c3_30, %c0_31, %c0_32] : memref<5x32x1xf32, #tpu.memory_space<vmem>>, vector<1x32x1xf32>
    %42 = vector.shape_cast %41 : vector<1x32x1xf32> to vector<32x1xf32>
    %43 = vector.broadcast %42 : vector<32x1xf32> to vector<32x128xf32>
    %44 = arith.addf %40, %43 : vector<32x128xf32>
    %cst_33 = arith.constant 0.000000e+00 : f32
    %45 = vector.broadcast %cst_33 : f32 to vector<32x128xf32>
    %46 = arith.maximumf %44, %45 : vector<32x128xf32>
    %c4 = arith.constant 4 : index
    %c0_34 = arith.constant 0 : index
    %c0_35 = arith.constant 0 : index
    %47 = vector.load %arg4[%c4, %c0_34, %c0_35] : memref<5x32x32xf32, #tpu.memory_space<vmem>>, vector<1x32x32xf32>
    %48 = vector.shape_cast %47 : vector<1x32x32xf32> to vector<32x32xf32>
    %cst_36 = arith.constant dense<0.000000e+00> : vector<32x128xf32>
    %49 = tpu.matmul %48, %46, %cst_36 {dimension_numbers = #tpu.dot_dimension_numbers<[1], [0], [0], [1], [0, 0, 1, 1], [], []>} : vector<32x32xf32>, vector<32x128xf32>, vector<32x128xf32> -> vector<32x128xf32>
    %c4_37 = arith.constant 4 : index
    %c0_38 = arith.constant 0 : index
    %c0_39 = arith.constant 0 : index
    %50 = vector.load %arg5[%c4_37, %c0_38, %c0_39] : memref<5x32x1xf32, #tpu.memory_space<vmem>>, vector<1x32x1xf32>
    %51 = vector.shape_cast %50 : vector<1x32x1xf32> to vector<32x1xf32>
    %52 = vector.broadcast %51 : vector<32x1xf32> to vector<32x128xf32>
    %53 = arith.addf %49, %52 : vector<32x128xf32>
    %cst_40 = arith.constant 0.000000e+00 : f32
    %54 = vector.broadcast %cst_40 : f32 to vector<32x128xf32>
    %55 = arith.maximumf %53, %54 : vector<32x128xf32>
    %c0_41 = arith.constant 0 : index
    %c0_42 = arith.constant 0 : index
    %56 = vector.load %arg6[%c0_41, %c0_42] : memref<1x32xf32, #tpu.memory_space<vmem>>, vector<1x32xf32>
    %cst_43 = arith.constant dense<0.000000e+00> : vector<1x128xf32>
    %57 = tpu.matmul %56, %55, %cst_43 {dimension_numbers = #tpu.dot_dimension_numbers<[1], [0], [0], [1], [0, 0, 1, 1], [], []>} : vector<1x32xf32>, vector<32x128xf32>, vector<1x128xf32> -> vector<1x128xf32>
    %c0_44 = arith.constant 0 : index
    %c0_45 = arith.constant 0 : index
    %58 = vector.load %arg7[%c0_44, %c0_45] : memref<1x1xf32, #tpu.memory_space<vmem>>, vector<1x1xf32>
    %59 = vector.broadcast %58 : vector<1x1xf32> to vector<1x128xf32>
    %60 = arith.addf %57, %59 : vector<1x128xf32>
    %c0_46 = arith.constant 0 : index
    %61 = arith.index_cast %1 : i32 to index
    %62 = vector.load %arg8[%c0_46, %61] : memref<1x128xf32, #tpu.memory_space<vmem>>, vector<1x128xf32>
    tpu.vector_store %arg8[%c0_46, %61], %60 {strides = array<i32>} : memref<1x128xf32, #tpu.memory_space<vmem>>, vector<1x128xf32>,
    %c1_i32 = arith.constant 1 : i32
    return
  }
  func.func @transform_0(%arg0: i32) -> (i32, i32) {
    %c0_i32 = arith.constant 0 : i32
    %c0_i32_0 = arith.constant 0 : i32
    return %arg0, %c0_i32 : i32, i32
  }
  func.func @transform_1(%arg0: i32) -> (i32, i32) {
    %c0_i32 = arith.constant 0 : i32
    %c0_i32_0 = arith.constant 0 : i32
    %c0_i32_1 = arith.constant 0 : i32
    return %c0_i32, %c0_i32_0 : i32, i32
  }
  func.func @transform_2(%arg0: i32) -> (i32, i32) {
    %c0_i32 = arith.constant 0 : i32
    %c0_i32_0 = arith.constant 0 : i32
    %c0_i32_1 = arith.constant 0 : i32
    return %c0_i32, %c0_i32_0 : i32, i32
  }
  func.func @transform_3(%arg0: i32) -> (i32, i32, i32) {
    %c0_i32 = arith.constant 0 : i32
    %c0_i32_0 = arith.constant 0 : i32
    %c0_i32_1 = arith.constant 0 : i32
    %c0_i32_2 = arith.constant 0 : i32
    return %c0_i32, %c0_i32_0, %c0_i32_1 : i32, i32, i32
  }
  func.func @transform_4(%arg0: i32) -> (i32, i32, i32) {
    %c0_i32 = arith.constant 0 : i32
    %c0_i32_0 = arith.constant 0 : i32
    %c0_i32_1 = arith.constant 0 : i32
    %c0_i32_2 = arith.constant 0 : i32
    return %c0_i32, %c0_i32_0, %c0_i32_1 : i32, i32, i32
  }
  func.func @transform_5(%arg0: i32) -> (i32, i32) {
    %c0_i32 = arith.constant 0 : i32
    %c0_i32_0 = arith.constant 0 : i32
    %c0_i32_1 = arith.constant 0 : i32
    return %c0_i32, %c0_i32_0 : i32, i32
  }
  func.func @transform_6(%arg0: i32) -> (i32, i32) {
    %c0_i32 = arith.constant 0 : i32
    %c0_i32_0 = arith.constant 0 : i32
    %c0_i32_1 = arith.constant 0 : i32
    return %c0_i32, %c0_i32_0 : i32, i32
  }
  func.func @transform_7(%arg0: i32) -> (i32, i32) {
    %c0_i32 = arith.constant 0 : i32
    %c0_i32_0 = arith.constant 0 : i32
    return %c0_i32, %arg0 : i32, i32
  }
}

</mosaic_0001>

<llo_original>
// kernel: net_forward.1
$region0: #{net_forward.1}
  #allocation0 [shape = 'u32[]', space=smem, size = 0x4, offset = 0x4, fixed_abs, tag = 'smem constant byte address 0x4 - core index']
  #allocation1 [shape = 'u32[144,128]{1,0:T(1,128)}', space=vmem, size = 0x12000, scoped, tag = 'internal scratch']
  #allocation2 [shape = 'f32[1,1]{1,0:T(1,128)S(1)}', space=vmem, size = 0x200, scoped, tag = 'scoped memory for net_forward.1']
  %s0 = inlined_call_operand.vmem [shape: f32[256,3], index: 0, kind: input, shape index: {}]
  %s1 = inlined_call_operand.vmem [shape: f32[32,3], index: 1, kind: input, shape index: {}]
  %s2 = inlined_call_operand.vmem [shape: f32[32,1], index: 2, kind: input, shape index: {}]
  %s3 = inlined_call_operand.vmem [shape: f32[5,32,32], index: 3, kind: input, shape index: {}]
  %s4 = inlined_call_operand.vmem [shape: f32[5,32,1], index: 4, kind: input, shape index: {}]
  %s5 = inlined_call_operand.vmem [shape: f32[1,32], index: 5, kind: input, shape index: {}]
  %s6 = inlined_call_operand.<no memory space> [shape: f32[1,1], index: 6, kind: input, shape index: {}]
  %s7 = inlined_call_operand.vmem [shape: f32[1,256], index: 7, kind: output, shape index: {}]
  %s8 = sld [smem:[#allocation0]]
  $region61: #{net_forward.1} parent=0
    _
  %s10 = ssub.s32 1, %s8
  %s11 = scalar_select 0, %s10, %s8
  %v12 = vstv %s6
  %13 = vst [vmem:[#allocation2] sm:$0x1] %v12
  loop: start=0, step=1, limit=4
  $region2: #{net_forward.1} parent=0 // loop_pre_header
    _
  $region3: #{net_forward.1} parent=0 // loop_header
    %s15 = sphi 0, %s19
    %p16 = scmp.ge.s32.totalorder %s15, 4
    %s25 = sphi 0, %s27
    %s28 = sphi 0, %s25
    %s29 = sphi 0, %s28
    %s45 = sphi 0, %s29
    %s49 = sphi 0, %s49
    %s51 = sphi 0, %s49
    %s52 = sphi 0, %s51
    %s66 = sphi 0, %s52
    %s70 = sphi 0, %s70
    %s72 = sphi 0, %s70
    %s73 = sphi 0, %s72
    %s87 = sphi 0, %s73
    %s91 = sphi 0, %s91
    %s93 = sphi 0, %s91
    %s94 = sphi 0, %s93
    %s108 = sphi 0, %s94
    %s112 = sphi 0, %s112
    %s114 = sphi 0, %s112
    %s115 = sphi 0, %s114
    %s129 = sphi 0, %s115
    %s133 = sphi 0, %s133
    %s135 = sphi 0, %s133
    %s136 = sphi 0, %s135
    %s150 = sphi 0, %s136
    %s154 = sphi 0, %s154
    %s156 = sphi 0, %s154
    %s157 = sphi 0, %s156
    %s171 = sphi 0, %s157
    %s177 = sphi 0, %s179
    %s180 = sphi 0, %s177
    %s181 = sphi 0, %s180
    %s197 = sphi 0, %s181
  $region4: #{net_forward.1} parent=0 // loop_header_branch
    %18 = sbr.rel (%p16) target = $region8
  $region5: #{net_forward.1} parent=0 // loop_body
    %s20 = ssub.s32 %s15, 1
    %s21 = ssub.s32 %s15, 2
    %s22 = sadd.s32 %s15, 1
    %s23 = ssub.s32 %s15, %s22
    %p24 = scmp.eq.s32.totalorder %s23, 0
    %s26 = sadd.s32 %s25, 1
    %s27 = scalar_select %p24, %s25, %s26
    %p30 = pneg %p24
    %p31 = scmp.eq.s32.totalorder %s15, 1
    %p32 = por %p30, %p31
    %p33 = scmp.ne.s32.totalorder %s25, %s28
    %p34 = scmp.eq.s32.totalorder %s15, 0
    %p35 = por %p33, %p34
    %p36 = scmp.ne.s32.totalorder %s25, %s28
    %p37 = scmp.eq.s32.totalorder %s20, 1
    %p38 = por %p36, %p37
    %p39 = scmp.ne.s32.totalorder %s28, %s29
    %p40 = scmp.eq.s32.totalorder %s20, 0
    %p41 = por %p39, %p40
    %p42 = scmp.ne.s32.totalorder %s28, %s29
    %p43 = scmp.eq.s32.totalorder %s21, 1
    %p44 = por %p42, %p43
    %p46 = scmp.ne.s32.totalorder %s29, %s45
    %p47 = scmp.eq.s32.totalorder %s21, 0
    %p48 = por %p46, %p47
    %s50 = sadd.s32 %s49, 1
    %p53 = scmp.eq.s32.totalorder %s15, 1
    %p54 = scmp.ne.s32.totalorder %s49, %s51
    %p55 = scmp.eq.s32.totalorder %s15, 0
    %p56 = por %p54, %p55
    %p57 = scmp.ne.s32.totalorder %s49, %s51
    %p58 = scmp.eq.s32.totalorder %s20, 1
    %p59 = por %p57, %p58
    %p60 = scmp.ne.s32.totalorder %s51, %s52
    %p61 = scmp.eq.s32.totalorder %s20, 0
    %p62 = por %p60, %p61
    %p63 = scmp.ne.s32.totalorder %s51, %s52
    %p64 = scmp.eq.s32.totalorder %s21, 1
    %p65 = por %p63, %p64
    %p67 = scmp.ne.s32.totalorder %s52, %s66
    %p68 = scmp.eq.s32.totalorder %s21, 0
    %p69 = por %p67, %p68
    %s71 = sadd.s32 %s70, 1
    %p74 = scmp.eq.s32.totalorder %s15, 1
    %p75 = scmp.ne.s32.totalorder %s70, %s72
    %p76 = scmp.eq.s32.totalorder %s15, 0
    %p77 = por %p75, %p76
    %p78 = scmp.ne.s32.totalorder %s70, %s72
    %p79 = scmp.eq.s32.totalorder %s20, 1
    %p80 = por %p78, %p79
    %p81 = scmp.ne.s32.totalorder %s72, %s73
    %p82 = scmp.eq.s32.totalorder %s20, 0
    %p83 = por %p81, %p82
    %p84 = scmp.ne.s32.totalorder %s72, %s73
    %p85 = scmp.eq.s32.totalorder %s21, 1
    %p86 = por %p84, %p85
    %p88 = scmp.ne.s32.totalorder %s73, %s87
    %p89 = scmp.eq.s32.totalorder %s21, 0
    %p90 = por %p88, %p89
    %s92 = sadd.s32 %s91, 1
    %p95 = scmp.eq.s32.totalorder %s15, 1
    %p96 = scmp.ne.s32.totalorder %s91, %s93
    %p97 = scmp.eq.s32.totalorder %s15, 0
    %p98 = por %p96, %p97
    %p99 = scmp.ne.s32.totalorder %s91, %s93
    %p100 = scmp.eq.s32.totalorder %s20, 1
    %p101 = por %p99, %p100
    %p102 = scmp.ne.s32.totalorder %s93, %s94
    %p103 = scmp.eq.s32.totalorder %s20, 0
    %p104 = por %p102, %p103
    %p105 = scmp.ne.s32.totalorder %s93, %s94
    %p106 = scmp.eq.s32.totalorder %s21, 1
    %p107 = por %p105, %p106
    %p109 = scmp.ne.s32.totalorder %s94, %s108
    %p110 = scmp.eq.s32.totalorder %s21, 0
    %p111 = por %p109, %p110
    %s113 = sadd.s32 %s112, 1
    %p116 = scmp.eq.s32.totalorder %s15, 1
    %p117 = scmp.ne.s32.totalorder %s112, %s114
    %p118 = scmp.eq.s32.totalorder %s15, 0
    %p119 = por %p117, %p118
    %p120 = scmp.ne.s32.totalorder %s112, %s114
    %p121 = scmp.eq.s32.totalorder %s20, 1
    %p122 = por %p120, %p121
    %p123 = scmp.ne.s32.totalorder %s114, %s115
    %p124 = scmp.eq.s32.totalorder %s20, 0
    %p125 = por %p123, %p124
    %p126 = scmp.ne.s32.totalorder %s114, %s115
    %p127 = scmp.eq.s32.totalorder %s21, 1
    %p128 = por %p126, %p127
    %p130 = scmp.ne.s32.totalorder %s115, %s129
    %p131 = scmp.eq.s32.totalorder %s21, 0
    %p132 = por %p130, %p131
    %s134 = sadd.s32 %s133, 1
    %p137 = scmp.eq.s32.totalorder %s15, 1
    %p138 = scmp.ne.s32.totalorder %s133, %s135
    %p139 = scmp.eq.s32.totalorder %s15, 0
    %p140 = por %p138, %p139
    %p141 = scmp.ne.s32.totalorder %s133, %s135
    %p142 = scmp.eq.s32.totalorder %s20, 1
    %p143 = por %p141, %p142
    %p144 = scmp.ne.s32.totalorder %s135, %s136
    %p145 = scmp.eq.s32.totalorder %s20, 0
    %p146 = por %p144, %p145
    %p147 = scmp.ne.s32.totalorder %s135, %s136
    %p148 = scmp.eq.s32.totalorder %s21, 1
    %p149 = por %p147, %p148
    %p151 = scmp.ne.s32.totalorder %s136, %s150
    %p152 = scmp.eq.s32.totalorder %s21, 0
    %p153 = por %p151, %p152
    %s155 = sadd.s32 %s154, 1
    %p158 = scmp.eq.s32.totalorder %s15, 1
    %p159 = scmp.ne.s32.totalorder %s154, %s156
    %p160 = scmp.eq.s32.totalorder %s15, 0
    %p161 = por %p159, %p160
    %p162 = scmp.ne.s32.totalorder %s154, %s156
    %p163 = scmp.eq.s32.totalorder %s20, 1
    %p164 = por %p162, %p163
    %p165 = scmp.ne.s32.totalorder %s156, %s157
    %p166 = scmp.eq.s32.totalorder %s20, 0
    %p167 = por %p165, %p166
    %p168 = scmp.ne.s32.totalorder %s156, %s157
    %p169 = scmp.eq.s32.totalorder %s21, 1
    %p170 = por %p168, %p169
    %p172 = scmp.ne.s32.totalorder %s157, %s171
    %p173 = scmp.eq.s32.totalorder %s21, 0
    %p174 = por %p172, %p173
    %s175 = ssub.s32 %s15, %s22
    %p176 = scmp.eq.s32.totalorder %s175, 0
    %s178 = sadd.s32 %s177, 1
    %s179 = scalar_select %p176, %s177, %s178
    %p182 = pneg %p176
    %p183 = scmp.eq.s32.totalorder %s15, 1
    %p184 = por %p182, %p183
    %p185 = scmp.ne.s32.totalorder %s177, %s180
    %p186 = scmp.eq.s32.totalorder %s15, 0
    %p187 = por %p185, %p186
    %p188 = scmp.ne.s32.totalorder %s177, %s180
    %p189 = scmp.eq.s32.totalorder %s20, 1
    %p190 = por %p188, %p189
    %p191 = scmp.ne.s32.totalorder %s180, %s181
    %p192 = scmp.eq.s32.totalorder %s20, 0
    %p193 = por %p191, %p192
    %p194 = scmp.ne.s32.totalorder %s180, %s181
    %p195 = scmp.eq.s32.totalorder %s21, 1
    %p196 = por %p194, %p195
    %p198 = scmp.ne.s32.totalorder %s181, %s197
    %p199 = scmp.eq.s32.totalorder %s21, 0
    %p200 = por %p198, %p199
    %p201 = scmp.le.s32.totalorder 1, %s15
    %p202 = scmp.lt.s32.totalorder %s15, 3
    %p203 = pnand %p201, %p202
    %p204 = pneg %p203
    // Predicated region
    $region9: #{net_forward.1} parent=5 // pred_check
      _
    $region10: #{net_forward.1} parent=5 // pred_check_branch
      %206 = sbr.rel (%p203) target = $region12
    $region11: #{net_forward.1} parent=5 // pred_region
      %s207 = ssub.s32 %s15, 1
      // Predicated region
      $region13: #{net_forward.1} parent=11 // pred_check
        %p208 = pneg %p62
      $region14: #{net_forward.1} parent=11 // pred_check_branch
        %210 = sbr.rel (%p208) target = $region16
      $region15: #{net_forward.1} parent=11 // pred_region
        _
      $region16: #{net_forward.1} parent=11 // pred_fallthru
        _
      // Predicated region
      $region17: #{net_forward.1} parent=11 // pred_check
        %p211 = pneg %p83
      $region18: #{net_forward.1} parent=11 // pred_check_branch
        %213 = sbr.rel (%p211) target = $region20
      $region19: #{net_forward.1} parent=11 // pred_region
        _
      $region20: #{net_forward.1} parent=11 // pred_fallthru
        _
      // Predicated region
      $region21: #{net_forward.1} parent=11 // pred_check
        %p214 = pneg %p104
      $region22: #{net_forward.1} parent=11 // pred_check_branch
        %216 = sbr.rel (%p214) target = $region24
      $region23: #{net_forward.1} parent=11 // pred_region
        _
      $region24: #{net_forward.1} parent=11 // pred_fallthru
        _
      // Predicated region
      $region25: #{net_forward.1} parent=11 // pred_check
        %p217 = pneg %p125
      $region26: #{net_forward.1} parent=11 // pred_check_branch
        %219 = sbr.rel (%p217) target = $region28
      $region27: #{net_forward.1} parent=11 // pred_region
        _
      $region28: #{net_forward.1} parent=11 // pred_fallthru
        _
      // Predicated region
      $region29: #{net_forward.1} parent=11 // pred_check
        %p220 = pneg %p146
      $region30: #{net_forward.1} parent=11 // pred_check_branch
        %222 = sbr.rel (%p220) target = $region32
      $region31: #{net_forward.1} parent=11 // pred_region
        _
      $region32: #{net_forward.1} parent=11 // pred_fallthru
        _
      // Predicated region
      $region33: #{net_forward.1} parent=11 // pred_check
        %p223 = pneg %p167
      $region34: #{net_forward.1} parent=11 // pred_check_branch
        %225 = sbr.rel (%p223) target = $region36
      $region35: #{net_forward.1} parent=11 // pred_region
        _
      $region36: #{net_forward.1} parent=11 // pred_fallthru
        _
    $region12: #{net_forward.1} parent=5 // pred_fallthru
      _
    %p226 = scmp.lt.s32.totalorder %s15, 2
    // Predicated region
    $region37: #{net_forward.1} parent=5 // pred_check
      %p227 = pneg %p226
    $region38: #{net_forward.1} parent=5 // pred_check_branch
      %229 = sbr.rel (%p227) target = $region40
    $region39: #{net_forward.1} parent=5 // pred_region
      // Predicated region
      $region41: #{net_forward.1} parent=39 // pred_check
        %p230 = pneg %p35
      $region42: #{net_forward.1} parent=39 // pred_check_branch
        %232 = sbr.rel (%p230) target = $region44
      $region43: #{net_forward.1} parent=39 // pred_region
        %s233 = smul.u32 16, %s15
        %p234 = scmp.lt.s32.totalorder %s233, 31
        %s235 = scalar_select %p234, %s233, 31
        %s236 = smul.addr %s235, 8
        %s237 = scalar_lea.vmem %s0, %s236
        %s238 = smul.u32 16, %s15
      $region44: #{net_forward.1} parent=39 // pred_fallthru
        _
    $region40: #{net_forward.1} parent=5 // pred_fallthru
      _
    %p239 = scmp.le.s32.totalorder 1, %s15
    %p240 = scmp.lt.s32.totalorder %s15, 3
    %p241 = pnand %p239, %p240
    %p242 = pneg %p241
    // Predicated region
    $region45: #{net_forward.1} parent=5 // pred_check
      _
    $region46: #{net_forward.1} parent=5 // pred_check_branch
      %244 = sbr.rel (%p241) target = $region48
    $region47: #{net_forward.1} parent=5 // pred_region
      %s245 = ssub.s32 %s15, 1
      %s246 = smul.u32 16, %s20
      %p247 = scmp.lt.s32.totalorder %s246, 31
      %s248 = scalar_select %p247, %s246, 31
      %s249 = smul.addr %s248, 8
      %s250 = scalar_lea.vmem %s0, %s249
      %p251 = pneg %p41
      %p252 = pneg %p38
      %p253 = pneg %p62
      %p254 = pneg %p59
      %p255 = pneg %p83
      %p256 = pneg %p80
      %p257 = pneg %p104
      %p258 = pneg %p101
      %p259 = pneg %p125
      %p260 = pneg %p122
      %p261 = pneg %p146
      %p262 = pneg %p143
      %p263 = pneg %p167
      %p264 = pneg %p164
      %p265 = pneg %p193
      %p266 = pneg %p190
      %p267 = scmp.lt.s32.totalorder %s20, 1
      %s268 = scalar_select %p267, %s20, 1
      %s269 = scalar_lea.vmem %s7, %s268
      %s270 = smul.u32 16, %s20
      %p271 = scmp.lt.s32.totalorder %s270, 31
      %s272 = scalar_select %p271, %s270, 31
      %s273 = smul.addr %s272, 8
      %s274 = scalar_lea.vmem %s0, %s273
      %s275 = smul.u32 16, %s20
      %p276 = scmp.lt.s32.totalorder %s20, 1
      %s277 = scalar_select %p276, %s20, 1
      %s278 = scalar_lea.vmem %s7, %s277
      %v279 = vld [vmem:[%s274] sm:$0xff]
      %v280 = vld [vmem:[%s274 + $0x8] sm:$0xff]
      %v281 = vld [vmem:[%s274 + $0x10] sm:$0xff]
      %v282 = vld [vmem:[%s274 + $0x18] sm:$0xff]
      %v283 = vld [vmem:[%s274 + $0x20] sm:$0xff]
      %v284 = vld [vmem:[%s274 + $0x28] sm:$0xff]
      %v285 = vld [vmem:[%s274 + $0x30] sm:$0xff]
      %v286 = vld [vmem:[%s274 + $0x38] sm:$0xff]
      %v287 = vld [vmem:[%s274 + $0x40] sm:$0xff]
      %v288 = vld [vmem:[%s274 + $0x48] sm:$0xff]
      %v289 = vld [vmem:[%s274 + $0x50] sm:$0xff]
      %v290 = vld [vmem:[%s274 + $0x58] sm:$0xff]
      %v291 = vld [vmem:[%s274 + $0x60] sm:$0xff]
      %v292 = vld [vmem:[%s274 + $0x68] sm:$0xff]
      %v293 = vld [vmem:[%s274 + $0x70] sm:$0xff]
      %v294 = vld [vmem:[%s274 + $0x78] sm:$0xff]
      %v295 = vld [vmem:[%s1] sm:$0xff]
      %v296 = vld [vmem:[%s1 + $0x8] sm:$0xff]
      %v297 = vld [vmem:[%s1 + $0x10] sm:$0xff]
      %v298 = vld [vmem:[%s1 + $0x18] sm:$0xff]
      %v299 = vld [vmem:[%s2] sm:$0xff]
      %v300 = vld [vmem:[%s2 + $0x8] sm:$0xff]
      %v301 = vld [vmem:[%s2 + $0x10] sm:$0xff]
      %v302 = vld [vmem:[%s2 + $0x18] sm:$0xff]
      %304 = vset.pattern.permute.xlu0 0
      %305 = vperm.xlu0 %304, %v299
      %v306 = vpop.permute.xlu0 %305
      %309 = vset.pattern.permute.xlu0 0
      %310 = vperm.xlu0 %309, %v300
      %v311 = vpop.permute.xlu0 %310
      %314 = vset.pattern.permute.xlu0 0
      %315 = vperm.xlu0 %314, %v301
      %v316 = vpop.permute.xlu0 %315
      %319 = vset.pattern.permute.xlu0 0
      %320 = vperm.xlu0 %319, %v302
      %v321 = vpop.permute.xlu0 %320
      %vm323 = vcmask 23552
      %v325 = vsel %vm323, %v295, 0
      %v328 = vsel %vm323, %v296, 0
      %v331 = vsel %vm323, %v297, 0
      %v334 = vsel %vm323, %v298, 0
      %v337 = vsel %vm323, %v279, 0
      %v340 = vsel %vm323, %v280, 0
      %v343 = vsel %vm323, %v281, 0
      %v346 = vsel %vm323, %v282, 0
      %v349 = vsel %vm323, %v283, 0
      %v352 = vsel %vm323, %v284, 0
      %v355 = vsel %vm323, %v285, 0
      %v358 = vsel %vm323, %v286, 0
      %v361 = vsel %vm323, %v287, 0
      %v364 = vsel %vm323, %v288, 0
      %v367 = vsel %vm323, %v289, 0
      %v370 = vsel %vm323, %v290, 0
      %v373 = vsel %vm323, %v291, 0
      %v376 = vsel %vm323, %v292, 0
      %v379 = vsel %vm323, %v293, 0
      %v382 = vsel %vm323, %v294, 0
      %384 = vmatprep.subr.mxu0 0.0
      %385 = vmatpush1.xpose.msra.mxu0 %v382
      %386 = vmatprep.subr.mxu0 0.0
      %387 = vmatpush1.xpose.msra.mxu0 %v379
      %388 = vmatprep.subr.mxu0 0.0
      %389 = vmatpush1.xpose.msra.mxu0 %v376
      %390 = vmatprep.subr.mxu0 0.0
      %391 = vmatpush1.xpose.msra.mxu0 %v373
      %392 = vmatprep.subr.mxu0 0.0
      %393 = vmatpush1.xpose.msra.mxu0 %v370
      %394 = vmatprep.subr.mxu0 0.0
      %395 = vmatpush1.xpose.msra.mxu0 %v367
      %396 = vmatprep.subr.mxu0 0.0
      %397 = vmatpush1.xpose.msra.mxu0 %v364
      %398 = vmatprep.subr.mxu0 0.0
      %399 = vmatpush1.xpose.msra.mxu0 %v361
      %400 = vmatprep.subr.mxu0 0.0
      %401 = vmatpush1.xpose.msra.mxu0 %v358
      %402 = vmatprep.subr.mxu0 0.0
      %403 = vmatpush1.xpose.msra.mxu0 %v355
      %404 = vmatprep.subr.mxu0 0.0
      %405 = vmatpush1.xpose.msra.mxu0 %v352
      %406 = vmatprep.subr.mxu0 0.0
      %407 = vmatpush1.xpose.msra.mxu0 %v349
      %408 = vmatprep.subr.mxu0 0.0
      %409 = vmatpush1.xpose.msra.mxu0 %v346
      %410 = vmatprep.subr.mxu0 0.0
      %411 = vmatpush1.xpose.msra.mxu0 %v343
      %412 = vmatprep.subr.mxu0 0.0
      %413 = vmatpush1.xpose.msra.mxu0 %v340
      %414 = vmatprep.subr.mxu0 0.0
      %415 = vmatpush1.xpose.msra.mxu0 %v337
      %416 = vmatprep.subr.mxu0 0.0
      %417 = vmatpush2.xpose.msra.mxu0 0.0
      %418 = vmatprep.subr.mxu0 0.0
      %419 = vmatpush2.xpose.msra.mxu0 0.0
      %420 = vmatprep.subr.mxu0 0.0
      %421 = vmatpush2.xpose.msra.mxu0 0.0
      %422 = vmatprep.subr.mxu0 0.0
      %423 = vmatpush2.xpose.msra.mxu0 0.0
      %424 = vmatprep.subr.mxu0 0.0
      %425 = vmatpush2.xpose.msra.mxu0 0.0
      %426 = vmatprep.subr.mxu0 0.0
      %427 = vmatpush2.xpose.msra.mxu0 0.0
      %428 = vmatprep.subr.mxu0 0.0
      %429 = vmatpush2.xpose.msra.mxu0 0.0
      %430 = vmatprep.subr.mxu0 0.0
      %431 = vmatpush2.xpose.msra.mxu0 0.0
      %432 = vmatprep.subr.mxu0 0.0
      %433 = vmatpush2.xpose.msra.mxu0 0.0
      %434 = vmatprep.subr.mxu0 0.0
      %435 = vmatpush2.xpose.msra.mxu0 0.0
      %436 = vmatprep.subr.mxu0 0.0
      %437 = vmatpush2.xpose.msra.mxu0 0.0
      %438 = vmatprep.subr.mxu0 0.0
      %439 = vmatpush2.xpose.msra.mxu0 0.0
      %440 = vmatprep.subr.mxu0 0.0
      %441 = vmatpush2.xpose.msra.mxu0 0.0
      %442 = vmatprep.subr.mxu0 0.0
      %443 = vmatpush2.xpose.msra.mxu0 0.0
      %444 = vmatprep.subr.mxu0 0.0
      %445 = vmatpush2.xpose.msra.mxu0 0.0
      %446 = vmatprep.subr.mxu0 0.0
      %447 = vmatpush2.xpose.msra.mxu0 0.0
      %448 = vmatprep.mubr.f32.mxu0 0.0
      %449 = vmatmul.mubr.f32.gmra.mxu0 %v325
      %v450 = vpop.f32.mrf.mxu0
      %v451 = vadd.f32 %v306, %v450
      %v452 = vpop.f32.mrf.mxu0
      %453 = vmatprep.mubr.f32.mxu0 0.0
      %454 = vmatmul.mubr.f32.gmra.mxu0 %v328
      %v455 = vpop.f32.mrf.mxu0
      %v456 = vadd.f32 %v311, %v455
      %v457 = vpop.f32.mrf.mxu0
      %458 = vmatprep.mubr.f32.mxu0 0.0
      %459 = vmatmul.mubr.f32.gmra.mxu0 %v331
      %v460 = vpop.f32.mrf.mxu0
      %v461 = vadd.f32 %v316, %v460
      %v462 = vpop.f32.mrf.mxu0
      %463 = vmatprep.mubr.f32.mxu0 0.0
      %464 = vmatmul.mubr.f32.gmra.mxu0 %v334
      %v465 = vpop.f32.mrf.mxu0
      %v466 = vadd.f32 %v321, %v465
      %v467 = vpop.f32.mrf.mxu0
      %468 = vdwg.mxu0
      %v469 = vmax.f32 %v451, 0.0
      %v470 = vmax.f32 %v456, 0.0
      %v471 = vmax.f32 %v461, 0.0
      %v472 = vmax.f32 %v466, 0.0
      %v473 = vld [vmem:[%s3] sm:$0xff]
      %v474 = vld [vmem:[%s3 + $0x8] sm:$0xff]
      %v475 = vld [vmem:[%s3 + $0x10] sm:$0xff]
      %v476 = vld [vmem:[%s3 + $0x18] sm:$0xff]
      %v477 = vld [vmem:[%s4] sm:$0xff]
      %v478 = vld [vmem:[%s4 + $0x8] sm:$0xff]
      %v479 = vld [vmem:[%s4 + $0x10] sm:$0xff]
      %v480 = vld [vmem:[%s4 + $0x18] sm:$0xff]
      %482 = vset.pattern.permute.xlu0 0
      %483 = vperm.xlu0 %482, %v477
      %v484 = vpop.permute.xlu0 %483
      %487 = vset.pattern.permute.xlu0 0
      %488 = vperm.xlu0 %487, %v478
      %v489 = vpop.permute.xlu0 %488
      %492 = vset.pattern.permute.xlu0 0
      %493 = vperm.xlu0 %492, %v479
      %v494 = vpop.permute.xlu0 %493
      %497 = vset.pattern.permute.xlu0 0
      %498 = vperm.xlu0 %497, %v480
      %v499 = vpop.permute.xlu0 %498
      %vm501 = vcmask 261120
      %v503 = vsel %vm501, %v473, 0
      %v506 = vsel %vm501, %v474, 0
      %v509 = vsel %vm501, %v475, 0
      %v512 = vsel %vm501, %v476, 0
      %514 = vmatprep.subr.mxu0 0.0
      %515 = vmatpush1.msra.mxu0 0.0
      %516 = vmatprep.subr.mxu0 0.0
      %517 = vmatpush1.msra.mxu0 0.0
      %518 = vmatprep.subr.mxu0 0.0
      %519 = vmatpush1.msra.mxu0 0.0
      %520 = vmatprep.subr.mxu0 0.0
      %521 = vmatpush1.msra.mxu0 0.0
      %522 = vmatprep.subr.mxu0 0.0
      %523 = vmatpush1.msra.mxu0 0.0
      %524 = vmatprep.subr.mxu0 0.0
      %525 = vmatpush1.msra.mxu0 0.0
      %526 = vmatprep.subr.mxu0 0.0
      %527 = vmatpush1.msra.mxu0 0.0
      %528 = vmatprep.subr.mxu0 0.0
      %529 = vmatpush1.msra.mxu0 0.0
      %530 = vmatprep.subr.mxu0 0.0
      %531 = vmatpush1.msra.mxu0 0.0
      %532 = vmatprep.subr.mxu0 0.0
      %533 = vmatpush1.msra.mxu0 0.0
      %534 = vmatprep.subr.mxu0 0.0
      %535 = vmatpush1.msra.mxu0 0.0
      %536 = vmatprep.subr.mxu0 0.0
      %537 = vmatpush1.msra.mxu0 0.0
      %538 = vmatprep.subr.mxu0 0.0
      %539 = vmatpush1.msra.mxu0 %v472
      %540 = vmatprep.subr.mxu0 0.0
      %541 = vmatpush1.msra.mxu0 %v471
      %542 = vmatprep.subr.mxu0 0.0
      %543 = vmatpush1.msra.mxu0 %v470
      %544 = vmatprep.subr.mxu0 0.0
      %545 = vmatpush1.msra.mxu0 %v469
      %546 = vmatprep.subr.mxu0 0.0
      %547 = vmatpush2.msra.mxu0 0.0
      %548 = vmatprep.subr.mxu0 0.0
      %549 = vmatpush2.msra.mxu0 0.0
      %550 = vmatprep.subr.mxu0 0.0
      %551 = vmatpush2.msra.mxu0 0.0
      %552 = vmatprep.subr.mxu0 0.0
      %553 = vmatpush2.msra.mxu0 0.0
      %554 = vmatprep.subr.mxu0 0.0
      %555 = vmatpush2.msra.mxu0 0.0
      %556 = vmatprep.subr.mxu0 0.0
      %557 = vmatpush2.msra.mxu0 0.0
      %558 = vmatprep.subr.mxu0 0.0
      %559 = vmatpush2.msra.mxu0 0.0
      %560 = vmatprep.subr.mxu0 0.0
      %561 = vmatpush2.msra.mxu0 0.0
      %562 = vmatprep.subr.mxu0 0.0
      %563 = vmatpush2.msra.mxu0 0.0
      %564 = vmatprep.subr.mxu0 0.0
      %565 = vmatpush2.msra.mxu0 0.0
      %566 = vmatprep.subr.mxu0 0.0
      %567 = vmatpush2.msra.mxu0 0.0
      %568 = vmatprep.subr.mxu0 0.0
      %569 = vmatpush2.msra.mxu0 0.0
      %570 = vmatprep.subr.mxu0 0.0
      %571 = vmatpush2.msra.mxu0 0.0
      %572 = vmatprep.subr.mxu0 0.0
      %573 = vmatpush2.msra.mxu0 0.0
      %574 = vmatprep.subr.mxu0 0.0
      %575 = vmatpush2.msra.mxu0 0.0
      %576 = vmatprep.subr.mxu0 0.0
      %577 = vmatpush2.msra.mxu0 0.0
      %578 = vmatprep.mubr.f32.mxu0 0.0
      %579 = vmatmul.mubr.f32.gmra.mxu0 %v503
      %v580 = vpop.f32.mrf.mxu0
      %v581 = vadd.f32 %v484, %v580
      %v582 = vpop.f32.mrf.mxu0
      %583 = vmatprep.mubr.f32.mxu0 0.0
      %584 = vmatmul.mubr.f32.gmra.mxu0 %v506
      %v585 = vpop.f32.mrf.mxu0
      %v586 = vadd.f32 %v489, %v585
      %v587 = vpop.f32.mrf.mxu0
      %588 = vmatprep.mubr.f32.mxu0 0.0
      %589 = vmatmul.mubr.f32.gmra.mxu0 %v509
      %v590 = vpop.f32.mrf.mxu0
      %v591 = vadd.f32 %v494, %v590
      %v592 = vpop.f32.mrf.mxu0
      %593 = vmatprep.mubr.f32.mxu0 0.0
      %594 = vmatmul.mubr.f32.gmra.mxu0 %v512
      %v595 = vpop.f32.mrf.mxu0
      %v596 = vadd.f32 %v499, %v595
      %v597 = vpop.f32.mrf.mxu0
      %598 = vdwg.mxu0
      %v599 = vmax.f32 %v581, 0.0
      %v600 = vmax.f32 %v586, 0.0
      %v601 = vmax.f32 %v591, 0.0
      %v602 = vmax.f32 %v596, 0.0
      %s603 = scalar_lea.vmem %s3, 32
      %v604 = vld [vmem:[%s603] sm:$0xff]
      %v605 = vld [vmem:[%s603 + $0x8] sm:$0xff]
      %v606 = vld [vmem:[%s603 + $0x10] sm:$0xff]
      %v607 = vld [vmem:[%s603 + $0x18] sm:$0xff]
      %s608 = scalar_lea.vmem %s4, 32
      %v609 = vld [vmem:[%s608] sm:$0xff]
      %v610 = vld [vmem:[%s608 + $0x8] sm:$0xff]
      %v611 = vld [vmem:[%s608 + $0x10] sm:$0xff]
      %v612 = vld [vmem:[%s608 + $0x18] sm:$0xff]
      %614 = vset.pattern.permute.xlu0 0
      %615 = vperm.xlu0 %614, %v609
      %v616 = vpop.permute.xlu0 %615
      %619 = vset.pattern.permute.xlu0 0
      %620 = vperm.xlu0 %619, %v610
      %v621 = vpop.permute.xlu0 %620
      %624 = vset.pattern.permute.xlu0 0
      %625 = vperm.xlu0 %624, %v611
      %v626 = vpop.permute.xlu0 %625
      %629 = vset.pattern.permute.xlu0 0
      %630 = vperm.xlu0 %629, %v612
      %v631 = vpop.permute.xlu0 %630
      %v634 = vsel %vm501, %v604, 0
      %v637 = vsel %vm501, %v605, 0
      %v640 = vsel %vm501, %v606, 0
      %v643 = vsel %vm501, %v607, 0
      %645 = vmatprep.subr.mxu0 0.0
      %646 = vmatpush1.msra.mxu0 0.0
      %647 = vmatprep.subr.mxu0 0.0
      %648 = vmatpush1.msra.mxu0 0.0
      %649 = vmatprep.subr.mxu0 0.0
      %650 = vmatpush1.msra.mxu0 0.0
      %651 = vmatprep.subr.mxu0 0.0
      %652 = vmatpush1.msra.mxu0 0.0
      %653 = vmatprep.subr.mxu0 0.0
      %654 = vmatpush1.msra.mxu0 0.0
      %655 = vmatprep.subr.mxu0 0.0
      %656 = vmatpush1.msra.mxu0 0.0
      %657 = vmatprep.subr.mxu0 0.0
      %658 = vmatpush1.msra.mxu0 0.0
      %659 = vmatprep.subr.mxu0 0.0
      %660 = vmatpush1.msra.mxu0 0.0
      %661 = vmatprep.subr.mxu0 0.0
      %662 = vmatpush1.msra.mxu0 0.0
      %663 = vmatprep.subr.mxu0 0.0
      %664 = vmatpush1.msra.mxu0 0.0
      %665 = vmatprep.subr.mxu0 0.0
      %666 = vmatpush1.msra.mxu0 0.0
      %667 = vmatprep.subr.mxu0 0.0
      %668 = vmatpush1.msra.mxu0 0.0
      %669 = vmatprep.subr.mxu0 0.0
      %670 = vmatpush1.msra.mxu0 %v602
      %671 = vmatprep.subr.mxu0 0.0
      %672 = vmatpush1.msra.mxu0 %v601
      %673 = vmatprep.subr.mxu0 0.0
      %674 = vmatpush1.msra.mxu0 %v600
      %675 = vmatprep.subr.mxu0 0.0
      %676 = vmatpush1.msra.mxu0 %v599
      %677 = vmatprep.subr.mxu0 0.0
      %678 = vmatpush2.msra.mxu0 0.0
      %679 = vmatprep.subr.mxu0 0.0
      %680 = vmatpush2.msra.mxu0 0.0
      %681 = vmatprep.subr.mxu0 0.0
      %682 = vmatpush2.msra.mxu0 0.0
      %683 = vmatprep.subr.mxu0 0.0
      %684 = vmatpush2.msra.mxu0 0.0
      %685 = vmatprep.subr.mxu0 0.0
      %686 = vmatpush2.msra.mxu0 0.0
      %687 = vmatprep.subr.mxu0 0.0
      %688 = vmatpush2.msra.mxu0 0.0
      %689 = vmatprep.subr.mxu0 0.0
      %690 = vmatpush2.msra.mxu0 0.0
      %691 = vmatprep.subr.mxu0 0.0
      %692 = vmatpush2.msra.mxu0 0.0
      %693 = vmatprep.subr.mxu0 0.0
      %694 = vmatpush2.msra.mxu0 0.0
      %695 = vmatprep.subr.mxu0 0.0
      %696 = vmatpush2.msra.mxu0 0.0
      %697 = vmatprep.subr.mxu0 0.0
      %698 = vmatpush2.msra.mxu0 0.0
      %699 = vmatprep.subr.mxu0 0.0
      %700 = vmatpush2.msra.mxu0 0.0
      %701 = vmatprep.subr.mxu0 0.0
      %702 = vmatpush2.msra.mxu0 0.0
      %703 = vmatprep.subr.mxu0 0.0
      %704 = vmatpush2.msra.mxu0 0.0
      %705 = vmatprep.subr.mxu0 0.0
      %706 = vmatpush2.msra.mxu0 0.0
      %707 = vmatprep.subr.mxu0 0.0
      %708 = vmatpush2.msra.mxu0 0.0
      %709 = vmatprep.mubr.f32.mxu0 0.0
      %710 = vmatmul.mubr.f32.gmra.mxu0 %v634
      %v711 = vpop.f32.mrf.mxu0
      %v712 = vadd.f32 %v616, %v711
      %v713 = vpop.f32.mrf.mxu0
      %714 = vmatprep.mubr.f32.mxu0 0.0
      %715 = vmatmul.mubr.f32.gmra.mxu0 %v637
      %v716 = vpop.f32.mrf.mxu0
      %v717 = vadd.f32 %v621, %v716
      %v718 = vpop.f32.mrf.mxu0
      %719 = vmatprep.mubr.f32.mxu0 0.0
      %720 = vmatmul.mubr.f32.gmra.mxu0 %v640
      %v721 = vpop.f32.mrf.mxu0
      %v722 = vadd.f32 %v626, %v721
      %v723 = vpop.f32.mrf.mxu0
      %724 = vmatprep.mubr.f32.mxu0 0.0
      %725 = vmatmul.mubr.f32.gmra.mxu0 %v643
      %v726 = vpop.f32.mrf.mxu0
      %v727 = vadd.f32 %v631, %v726
      %v728 = vpop.f32.mrf.mxu0
      %729 = vdwg.mxu0
      %v730 = vmax.f32 %v712, 0.0
      %v731 = vmax.f32 %v717, 0.0
      %v732 = vmax.f32 %v722, 0.0
      %v733 = vmax.f32 %v727, 0.0
      %s734 = scalar_lea.vmem %s3, 64
      %v735 = vld [vmem:[%s734] sm:$0xff]
      %v736 = vld [vmem:[%s734 + $0x8] sm:$0xff]
      %v737 = vld [vmem:[%s734 + $0x10] sm:$0xff]
      %v738 = vld [vmem:[%s734 + $0x18] sm:$0xff]
      %s739 = scalar_lea.vmem %s4, 64
      %v740 = vld [vmem:[%s739] sm:$0xff]
      %v741 = vld [vmem:[%s739 + $0x8] sm:$0xff]
      %v742 = vld [vmem:[%s739 + $0x10] sm:$0xff]
      %v743 = vld [vmem:[%s739 + $0x18] sm:$0xff]
      %745 = vset.pattern.permute.xlu0 0
      %746 = vperm.xlu0 %745, %v740
      %v747 = vpop.permute.xlu0 %746
      %750 = vset.pattern.permute.xlu0 0
      %751 = vperm.xlu0 %750, %v741
      %v752 = vpop.permute.xlu0 %751
      %755 = vset.pattern.permute.xlu0 0
      %756 = vperm.xlu0 %755, %v742
      %v757 = vpop.permute.xlu0 %756
      %760 = vset.pattern.permute.xlu0 0
      %761 = vperm.xlu0 %760, %v743
      %v762 = vpop.permute.xlu0 %761
      %v765 = vsel %vm501, %v735, 0
      %v768 = vsel %vm501, %v736, 0
      %v771 = vsel %vm501, %v737, 0
      %v774 = vsel %vm501, %v738, 0
      %776 = vmatprep.subr.mxu0 0.0
      %777 = vmatpush1.msra.mxu0 0.0
      %778 = vmatprep.subr.mxu0 0.0
      %779 = vmatpush1.msra.mxu0 0.0
      %780 = vmatprep.subr.mxu0 0.0
      %781 = vmatpush1.msra.mxu0 0.0
      %782 = vmatprep.subr.mxu0 0.0
      %783 = vmatpush1.msra.mxu0 0.0
      %784 = vmatprep.subr.mxu0 0.0
      %785 = vmatpush1.msra.mxu0 0.0
      %786 = vmatprep.subr.mxu0 0.0
      %787 = vmatpush1.msra.mxu0 0.0
      %788 = vmatprep.subr.mxu0 0.0
      %789 = vmatpush1.msra.mxu0 0.0
      %790 = vmatprep.subr.mxu0 0.0
      %791 = vmatpush1.msra.mxu0 0.0
      %792 = vmatprep.subr.mxu0 0.0
      %793 = vmatpush1.msra.mxu0 0.0
      %794 = vmatprep.subr.mxu0 0.0
      %795 = vmatpush1.msra.mxu0 0.0
      %796 = vmatprep.subr.mxu0 0.0
      %797 = vmatpush1.msra.mxu0 0.0
      %798 = vmatprep.subr.mxu0 0.0
      %799 = vmatpush1.msra.mxu0 0.0
      %800 = vmatprep.subr.mxu0 0.0
      %801 = vmatpush1.msra.mxu0 %v733
      %802 = vmatprep.subr.mxu0 0.0
      %803 = vmatpush1.msra.mxu0 %v732
      %804 = vmatprep.subr.mxu0 0.0
      %805 = vmatpush1.msra.mxu0 %v731
      %806 = vmatprep.subr.mxu0 0.0
      %807 = vmatpush1.msra.mxu0 %v730
      %808 = vmatprep.subr.mxu0 0.0
      %809 = vmatpush2.msra.mxu0 0.0
      %810 = vmatprep.subr.mxu0 0.0
      %811 = vmatpush2.msra.mxu0 0.0
      %812 = vmatprep.subr.mxu0 0.0
      %813 = vmatpush2.msra.mxu0 0.0
      %814 = vmatprep.subr.mxu0 0.0
      %815 = vmatpush2.msra.mxu0 0.0
      %816 = vmatprep.subr.mxu0 0.0
      %817 = vmatpush2.msra.mxu0 0.0
      %818 = vmatprep.subr.mxu0 0.0
      %819 = vmatpush2.msra.mxu0 0.0
      %820 = vmatprep.subr.mxu0 0.0
      %821 = vmatpush2.msra.mxu0 0.0
      %822 = vmatprep.subr.mxu0 0.0
      %823 = vmatpush2.msra.mxu0 0.0
      %824 = vmatprep.subr.mxu0 0.0
      %825 = vmatpush2.msra.mxu0 0.0
      %826 = vmatprep.subr.mxu0 0.0
      %827 = vmatpush2.msra.mxu0 0.0
      %828 = vmatprep.subr.mxu0 0.0
      %829 = vmatpush2.msra.mxu0 0.0
      %830 = vmatprep.subr.mxu0 0.0
      %831 = vmatpush2.msra.mxu0 0.0
      %832 = vmatprep.subr.mxu0 0.0
      %833 = vmatpush2.msra.mxu0 0.0
      %834 = vmatprep.subr.mxu0 0.0
      %835 = vmatpush2.msra.mxu0 0.0
      %836 = vmatprep.subr.mxu0 0.0
      %837 = vmatpush2.msra.mxu0 0.0
      %838 = vmatprep.subr.mxu0 0.0
      %839 = vmatpush2.msra.mxu0 0.0
      %840 = vmatprep.mubr.f32.mxu0 0.0
      %841 = vmatmul.mubr.f32.gmra.mxu0 %v765
      %v842 = vpop.f32.mrf.mxu0
      %v843 = vadd.f32 %v747, %v842
      %v844 = vpop.f32.mrf.mxu0
      %845 = vmatprep.mubr.f32.mxu0 0.0
      %846 = vmatmul.mubr.f32.gmra.mxu0 %v768
      %v847 = vpop.f32.mrf.mxu0
      %v848 = vadd.f32 %v752, %v847
      %v849 = vpop.f32.mrf.mxu0
      %850 = vmatprep.mubr.f32.mxu0 0.0
      %851 = vmatmul.mubr.f32.gmra.mxu0 %v771
      %v852 = vpop.f32.mrf.mxu0
      %v853 = vadd.f32 %v757, %v852
      %v854 = vpop.f32.mrf.mxu0
      %855 = vmatprep.mubr.f32.mxu0 0.0
      %856 = vmatmul.mubr.f32.gmra.mxu0 %v774
      %v857 = vpop.f32.mrf.mxu0
      %v858 = vadd.f32 %v762, %v857
      %v859 = vpop.f32.mrf.mxu0
      %860 = vdwg.mxu0
      %v861 = vmax.f32 %v843, 0.0
      %v862 = vmax.f32 %v848, 0.0
      %v863 = vmax.f32 %v853, 0.0
      %v864 = vmax.f32 %v858, 0.0
      %s865 = scalar_lea.vmem %s3, 96
      %v866 = vld [vmem:[%s865] sm:$0xff]
      %v867 = vld [vmem:[%s865 + $0x8] sm:$0xff]
      %v868 = vld [vmem:[%s865 + $0x10] sm:$0xff]
      %v869 = vld [vmem:[%s865 + $0x18] sm:$0xff]
      %s870 = scalar_lea.vmem %s4, 96
      %v871 = vld [vmem:[%s870] sm:$0xff]
      %v872 = vld [vmem:[%s870 + $0x8] sm:$0xff]
      %v873 = vld [vmem:[%s870 + $0x10] sm:$0xff]
      %v874 = vld [vmem:[%s870 + $0x18] sm:$0xff]
      %876 = vset.pattern.permute.xlu0 0
      %877 = vperm.xlu0 %876, %v871
      %v878 = vpop.permute.xlu0 %877
      %881 = vset.pattern.permute.xlu0 0
      %882 = vperm.xlu0 %881, %v872
      %v883 = vpop.permute.xlu0 %882
      %886 = vset.pattern.permute.xlu0 0
      %887 = vperm.xlu0 %886, %v873
      %v888 = vpop.permute.xlu0 %887
      %891 = vset.pattern.permute.xlu0 0
      %892 = vperm.xlu0 %891, %v874
      %v893 = vpop.permute.xlu0 %892
      %v896 = vsel %vm501, %v866, 0
      %v899 = vsel %vm501, %v867, 0
      %v902 = vsel %vm501, %v868, 0
      %v905 = vsel %vm501, %v869, 0
      %907 = vmatprep.subr.mxu0 0.0
      %908 = vmatpush1.msra.mxu0 0.0
      %909 = vmatprep.subr.mxu0 0.0
      %910 = vmatpush1.msra.mxu0 0.0
      %911 = vmatprep.subr.mxu0 0.0
      %912 = vmatpush1.msra.mxu0 0.0
      %913 = vmatprep.subr.mxu0 0.0
      %914 = vmatpush1.msra.mxu0 0.0
      %915 = vmatprep.subr.mxu0 0.0
      %916 = vmatpush1.msra.mxu0 0.0
      %917 = vmatprep.subr.mxu0 0.0
      %918 = vmatpush1.msra.mxu0 0.0
      %919 = vmatprep.subr.mxu0 0.0
      %920 = vmatpush1.msra.mxu0 0.0
      %921 = vmatprep.subr.mxu0 0.0
      %922 = vmatpush1.msra.mxu0 0.0
      %923 = vmatprep.subr.mxu0 0.0
      %924 = vmatpush1.msra.mxu0 0.0
      %925 = vmatprep.subr.mxu0 0.0
      %926 = vmatpush1.msra.mxu0 0.0
      %927 = vmatprep.subr.mxu0 0.0
      %928 = vmatpush1.msra.mxu0 0.0
      %929 = vmatprep.subr.mxu0 0.0
      %930 = vmatpush1.msra.mxu0 0.0
      %931 = vmatprep.subr.mxu0 0.0
      %932 = vmatpush1.msra.mxu0 %v864
      %933 = vmatprep.subr.mxu0 0.0
      %934 = vmatpush1.msra.mxu0 %v863
      %935 = vmatprep.subr.mxu0 0.0
      %936 = vmatpush1.msra.mxu0 %v862
      %937 = vmatprep.subr.mxu0 0.0
      %938 = vmatpush1.msra.mxu0 %v861
      %939 = vmatprep.subr.mxu0 0.0
      %940 = vmatpush2.msra.mxu0 0.0
      %941 = vmatprep.subr.mxu0 0.0
      %942 = vmatpush2.msra.mxu0 0.0
      %943 = vmatprep.subr.mxu0 0.0
      %944 = vmatpush2.msra.mxu0 0.0
      %945 = vmatprep.subr.mxu0 0.0
      %946 = vmatpush2.msra.mxu0 0.0
      %947 = vmatprep.subr.mxu0 0.0
      %948 = vmatpush2.msra.mxu0 0.0
      %949 = vmatprep.subr.mxu0 0.0
      %950 = vmatpush2.msra.mxu0 0.0
      %951 = vmatprep.subr.mxu0 0.0
      %952 = vmatpush2.msra.mxu0 0.0
      %953 = vmatprep.subr.mxu0 0.0
      %954 = vmatpush2.msra.mxu0 0.0
      %955 = vmatprep.subr.mxu0 0.0
      %956 = vmatpush2.msra.mxu0 0.0
      %957 = vmatprep.subr.mxu0 0.0
      %958 = vmatpush2.msra.mxu0 0.0
      %959 = vmatprep.subr.mxu0 0.0
      %960 = vmatpush2.msra.mxu0 0.0
      %961 = vmatprep.subr.mxu0 0.0
      %962 = vmatpush2.msra.mxu0 0.0
      %963 = vmatprep.subr.mxu0 0.0
      %964 = vmatpush2.msra.mxu0 0.0
      %965 = vmatprep.subr.mxu0 0.0
      %966 = vmatpush2.msra.mxu0 0.0
      %967 = vmatprep.subr.mxu0 0.0
      %968 = vmatpush2.msra.mxu0 0.0
      %969 = vmatprep.subr.mxu0 0.0
      %970 = vmatpush2.msra.mxu0 0.0
      %971 = vmatprep.mubr.f32.mxu0 0.0
      %972 = vmatmul.mubr.f32.gmra.mxu0 %v896
      %v973 = vpop.f32.mrf.mxu0
      %v974 = vadd.f32 %v878, %v973
      %v975 = vpop.f32.mrf.mxu0
      %976 = vmatprep.mubr.f32.mxu0 0.0
      %977 = vmatmul.mubr.f32.gmra.mxu0 %v899
      %v978 = vpop.f32.mrf.mxu0
      %v979 = vadd.f32 %v883, %v978
      %v980 = vpop.f32.mrf.mxu0
      %981 = vmatprep.mubr.f32.mxu0 0.0
      %982 = vmatmul.mubr.f32.gmra.mxu0 %v902
      %v983 = vpop.f32.mrf.mxu0
      %v984 = vadd.f32 %v888, %v983
      %v985 = vpop.f32.mrf.mxu0
      %986 = vmatprep.mubr.f32.mxu0 0.0
      %987 = vmatmul.mubr.f32.gmra.mxu0 %v905
      %v988 = vpop.f32.mrf.mxu0
      %v989 = vadd.f32 %v893, %v988
      %v990 = vpop.f32.mrf.mxu0
      %991 = vdwg.mxu0
      %v992 = vmax.f32 %v974, 0.0
      %v993 = vmax.f32 %v979, 0.0
      %v994 = vmax.f32 %v984, 0.0
      %v995 = vmax.f32 %v989, 0.0
      %s996 = scalar_lea.vmem %s3, 128
      %v997 = vld [vmem:[%s996] sm:$0xff]
      %v998 = vld [vmem:[%s996 + $0x8] sm:$0xff]
      %v999 = vld [vmem:[%s996 + $0x10] sm:$0xff]
      %v1000 = vld [vmem:[%s996 + $0x18] sm:$0xff]
      %s1001 = scalar_lea.vmem %s4, 128
      %v1002 = vld [vmem:[%s1001] sm:$0xff]
      %v1003 = vld [vmem:[%s1001 + $0x8] sm:$0xff]
      %v1004 = vld [vmem:[%s1001 + $0x10] sm:$0xff]
      %v1005 = vld [vmem:[%s1001 + $0x18] sm:$0xff]
      %1007 = vset.pattern.permute.xlu0 0
      %1008 = vperm.xlu0 %1007, %v1002
      %v1009 = vpop.permute.xlu0 %1008
      %1012 = vset.pattern.permute.xlu0 0
      %1013 = vperm.xlu0 %1012, %v1003
      %v1014 = vpop.permute.xlu0 %1013
      %1017 = vset.pattern.permute.xlu0 0
      %1018 = vperm.xlu0 %1017, %v1004
      %v1019 = vpop.permute.xlu0 %1018
      %1022 = vset.pattern.permute.xlu0 0
      %1023 = vperm.xlu0 %1022, %v1005
      %v1024 = vpop.permute.xlu0 %1023
      %v1027 = vsel %vm501, %v997, 0
      %v1030 = vsel %vm501, %v998, 0
      %v1033 = vsel %vm501, %v999, 0
      %v1036 = vsel %vm501, %v1000, 0
      %1038 = vmatprep.subr.mxu0 0.0
      %1039 = vmatpush1.msra.mxu0 0.0
      %1040 = vmatprep.subr.mxu0 0.0
      %1041 = vmatpush1.msra.mxu0 0.0
      %1042 = vmatprep.subr.mxu0 0.0
      %1043 = vmatpush1.msra.mxu0 0.0
      %1044 = vmatprep.subr.mxu0 0.0
      %1045 = vmatpush1.msra.mxu0 0.0
      %1046 = vmatprep.subr.mxu0 0.0
      %1047 = vmatpush1.msra.mxu0 0.0
      %1048 = vmatprep.subr.mxu0 0.0
      %1049 = vmatpush1.msra.mxu0 0.0
      %1050 = vmatprep.subr.mxu0 0.0
      %1051 = vmatpush1.msra.mxu0 0.0
      %1052 = vmatprep.subr.mxu0 0.0
      %1053 = vmatpush1.msra.mxu0 0.0
      %1054 = vmatprep.subr.mxu0 0.0
      %1055 = vmatpush1.msra.mxu0 0.0
      %1056 = vmatprep.subr.mxu0 0.0
      %1057 = vmatpush1.msra.mxu0 0.0
      %1058 = vmatprep.subr.mxu0 0.0
      %1059 = vmatpush1.msra.mxu0 0.0
      %1060 = vmatprep.subr.mxu0 0.0
      %1061 = vmatpush1.msra.mxu0 0.0
      %1062 = vmatprep.subr.mxu0 0.0
      %1063 = vmatpush1.msra.mxu0 %v995
      %1064 = vmatprep.subr.mxu0 0.0
      %1065 = vmatpush1.msra.mxu0 %v994
      %1066 = vmatprep.subr.mxu0 0.0
      %1067 = vmatpush1.msra.mxu0 %v993
      %1068 = vmatprep.subr.mxu0 0.0
      %1069 = vmatpush1.msra.mxu0 %v992
      %1070 = vmatprep.subr.mxu0 0.0
      %1071 = vmatpush2.msra.mxu0 0.0
      %1072 = vmatprep.subr.mxu0 0.0
      %1073 = vmatpush2.msra.mxu0 0.0
      %1074 = vmatprep.subr.mxu0 0.0
      %1075 = vmatpush2.msra.mxu0 0.0
      %1076 = vmatprep.subr.mxu0 0.0
      %1077 = vmatpush2.msra.mxu0 0.0
      %1078 = vmatprep.subr.mxu0 0.0
      %1079 = vmatpush2.msra.mxu0 0.0
      %1080 = vmatprep.subr.mxu0 0.0
      %1081 = vmatpush2.msra.mxu0 0.0
      %1082 = vmatprep.subr.mxu0 0.0
      %1083 = vmatpush2.msra.mxu0 0.0
      %1084 = vmatprep.subr.mxu0 0.0
      %1085 = vmatpush2.msra.mxu0 0.0
      %1086 = vmatprep.subr.mxu0 0.0
      %1087 = vmatpush2.msra.mxu0 0.0
      %1088 = vmatprep.subr.mxu0 0.0
      %1089 = vmatpush2.msra.mxu0 0.0
      %1090 = vmatprep.subr.mxu0 0.0
      %1091 = vmatpush2.msra.mxu0 0.0
      %1092 = vmatprep.subr.mxu0 0.0
      %1093 = vmatpush2.msra.mxu0 0.0
      %1094 = vmatprep.subr.mxu0 0.0
      %1095 = vmatpush2.msra.mxu0 0.0
      %1096 = vmatprep.subr.mxu0 0.0
      %1097 = vmatpush2.msra.mxu0 0.0
      %1098 = vmatprep.subr.mxu0 0.0
      %1099 = vmatpush2.msra.mxu0 0.0
      %1100 = vmatprep.subr.mxu0 0.0
      %1101 = vmatpush2.msra.mxu0 0.0
      %1102 = vmatprep.mubr.f32.mxu0 0.0
      %1103 = vmatmul.mubr.f32.gmra.mxu0 %v1027
      %v1104 = vpop.f32.mrf.mxu0
      %v1105 = vadd.f32 %v1009, %v1104
      %v1106 = vpop.f32.mrf.mxu0
      %1107 = vmatprep.mubr.f32.mxu0 0.0
      %1108 = vmatmul.mubr.f32.gmra.mxu0 %v1030
      %v1109 = vpop.f32.mrf.mxu0
      %v1110 = vadd.f32 %v1014, %v1109
      %v1111 = vpop.f32.mrf.mxu0
      %1112 = vmatprep.mubr.f32.mxu0 0.0
      %1113 = vmatmul.mubr.f32.gmra.mxu0 %v1033
      %v1114 = vpop.f32.mrf.mxu0
      %v1115 = vadd.f32 %v1019, %v1114
      %v1116 = vpop.f32.mrf.mxu0
      %1117 = vmatprep.mubr.f32.mxu0 0.0
      %1118 = vmatmul.mubr.f32.gmra.mxu0 %v1036
      %v1119 = vpop.f32.mrf.mxu0
      %v1120 = vadd.f32 %v1024, %v1119
      %v1121 = vpop.f32.mrf.mxu0
      %1122 = vdwg.mxu0
      %v1123 = vmax.f32 %v1105, 0.0
      %v1124 = vmax.f32 %v1110, 0.0
      %v1125 = vmax.f32 %v1115, 0.0
      %v1126 = vmax.f32 %v1120, 0.0
      %v1127 = vld [vmem:[%s5] sm:$0x1]
      %v1128 = vld [vmem:[#allocation2] sm:$0x1]
      %1130 = vset.pattern.permute.xlu0 0
      %1131 = vperm.xlu0 %1130, %v1128
      %v1132 = vpop.permute.xlu0 %1131
      %v1134 = vlaneseq
      %v1135 = vshrl.u32 %v1134, 7
      %v1136 = vsub.s32 0, %v1135
      %v1137 = vrot.slane %v1132, %v1136
      %v1139 = vsel %vm501, %v1127, 0
      %1141 = vmatprep.subr.mxu0 0.0
      %1142 = vmatpush1.msra.mxu0 0.0
      %1143 = vmatprep.subr.mxu0 0.0
      %1144 = vmatpush1.msra.mxu0 0.0
      %1145 = vmatprep.subr.mxu0 0.0
      %1146 = vmatpush1.msra.mxu0 0.0
      %1147 = vmatprep.subr.mxu0 0.0
      %1148 = vmatpush1.msra.mxu0 0.0
      %1149 = vmatprep.subr.mxu0 0.0
      %1150 = vmatpush1.msra.mxu0 0.0
      %1151 = vmatprep.subr.mxu0 0.0
      %1152 = vmatpush1.msra.mxu0 0.0
      %1153 = vmatprep.subr.mxu0 0.0
      %1154 = vmatpush1.msra.mxu0 0.0
      %1155 = vmatprep.subr.mxu0 0.0
      %1156 = vmatpush1.msra.mxu0 0.0
      %1157 = vmatprep.subr.mxu0 0.0
      %1158 = vmatpush1.msra.mxu0 0.0
      %1159 = vmatprep.subr.mxu0 0.0
      %1160 = vmatpush1.msra.mxu0 0.0
      %1161 = vmatprep.subr.mxu0 0.0
      %1162 = vmatpush1.msra.mxu0 0.0
      %1163 = vmatprep.subr.mxu0 0.0
      %1164 = vmatpush1.msra.mxu0 0.0
      %1165 = vmatprep.subr.mxu0 0.0
      %1166 = vmatpush1.msra.mxu0 %v1126
      %1167 = vmatprep.subr.mxu0 0.0
      %1168 = vmatpush1.msra.mxu0 %v1125
      %1169 = vmatprep.subr.mxu0 0.0
      %1170 = vmatpush1.msra.mxu0 %v1124
      %1171 = vmatprep.subr.mxu0 0.0
      %1172 = vmatpush1.msra.mxu0 %v1123
      %1173 = vmatprep.subr.mxu0 0.0
      %1174 = vmatpush2.msra.mxu0 0.0
      %1175 = vmatprep.subr.mxu0 0.0
      %1176 = vmatpush2.msra.mxu0 0.0
      %1177 = vmatprep.subr.mxu0 0.0
      %1178 = vmatpush2.msra.mxu0 0.0
      %1179 = vmatprep.subr.mxu0 0.0
      %1180 = vmatpush2.msra.mxu0 0.0
      %1181 = vmatprep.subr.mxu0 0.0
      %1182 = vmatpush2.msra.mxu0 0.0
      %1183 = vmatprep.subr.mxu0 0.0
      %1184 = vmatpush2.msra.mxu0 0.0
      %1185 = vmatprep.subr.mxu0 0.0
      %1186 = vmatpush2.msra.mxu0 0.0
      %1187 = vmatprep.subr.mxu0 0.0
      %1188 = vmatpush2.msra.mxu0 0.0
      %1189 = vmatprep.subr.mxu0 0.0
      %1190 = vmatpush2.msra.mxu0 0.0
      %1191 = vmatprep.subr.mxu0 0.0
      %1192 = vmatpush2.msra.mxu0 0.0
      %1193 = vmatprep.subr.mxu0 0.0
      %1194 = vmatpush2.msra.mxu0 0.0
      %1195 = vmatprep.subr.mxu0 0.0
      %1196 = vmatpush2.msra.mxu0 0.0
      %1197 = vmatprep.subr.mxu0 0.0
      %1198 = vmatpush2.msra.mxu0 0.0
      %1199 = vmatprep.subr.mxu0 0.0
      %1200 = vmatpush2.msra.mxu0 0.0
      %1201 = vmatprep.subr.mxu0 0.0
      %1202 = vmatpush2.msra.mxu0 0.0
      %1203 = vmatprep.subr.mxu0 0.0
      %1204 = vmatpush2.msra.mxu0 0.0
      %1205 = vmatprep.mubr.f32.mxu0 0.0
      %1206 = vmatmul.mubr.f32.gmra.mxu0 %v1139
      %v1207 = vpop.f32.mrf.mxu0
      %v1208 = vadd.f32 %v1137, %v1207
      %v1209 = vpop.f32.mrf.mxu0
      %1210 = vdwg.mxu0
      %1211 = vst [vmem:[%s278] sm:$0x1] %v1208
      %p1212 = scmp.lt.s32.totalorder %s20, 1
      %s1213 = scalar_select %p1212, %s20, 1
      %s1214 = scalar_lea.vmem %s7, %s1213
      // Predicated region
      $region49: #{net_forward.1} parent=47 // pred_check
        %p1215 = pneg %p190
      $region50: #{net_forward.1} parent=47 // pred_check_branch
        %1217 = sbr.rel (%p1215) target = $region52
      $region51: #{net_forward.1} parent=47 // pred_region
        _
      $region52: #{net_forward.1} parent=47 // pred_fallthru
        _
    $region48: #{net_forward.1} parent=5 // pred_fallthru
      _
    %p1218 = scmp.le.s32.totalorder 2, %s15
    // Predicated region
    $region53: #{net_forward.1} parent=5 // pred_check
      %p1219 = pneg %p1218
    $region54: #{net_forward.1} parent=5 // pred_check_branch
      %1221 = sbr.rel (%p1219) target = $region56
    $region55: #{net_forward.1} parent=5 // pred_region
      %s1222 = ssub.s32 %s15, 2
      // Predicated region
      $region57: #{net_forward.1} parent=55 // pred_check
        %p1223 = pneg %p196
      $region58: #{net_forward.1} parent=55 // pred_check_branch
        %1225 = sbr.rel (%p1223) target = $region60
      $region59: #{net_forward.1} parent=55 // pred_region
        %p1226 = scmp.lt.s32.totalorder %s21, 1
        %s1227 = scalar_select %p1226, %s21, 1
        %s1228 = scalar_lea.vmem %s7, %s1227
      $region60: #{net_forward.1} parent=55 // pred_fallthru
        _
    $region56: #{net_forward.1} parent=5 // pred_fallthru
      _
  $region6: #{net_forward.1} parent=0 // loop_footer
    %s19 = sadd.s32 1, %s15
  $region7: #{net_forward.1} parent=0 // loop_footer_branch
    %14 = sbr.rel target = $region3
  $region8: #{net_forward.1} parent=0 // loop_exit
    _

</llo_original>
